<compile_context>
chip_gen: v7x
topology: tpu7x:2x2x1
jax: 0.10.0
libtpu: 0.0.40
codegen_flags: <defaults>
</compile_context>

<pallas_src>
import functools

import jax
import jax.numpy as jnp
from jax.experimental import pallas as pl
from jax.experimental.pallas import tpu as pltpu


def _dwconv_kernel(w_ref, b_ref, x_ref, o_ref, *, K, KH, KW, stride, Hout, Wout):
    # w_ref: (K, KH*KW, C) f32 VMEM   -- per-group-member tap weights, channels on lanes
    # b_ref: (K, C)        f32 VMEM   -- per-group-member bias
    # x_ref: (s*s, Hp, Wp, C)  VMEM   -- one batch, pixel-unshuffled, channels-last
    # o_ref: (K, Hout, Wout, C) VMEM  -- channels-last output for this batch
    s = stride
    C = o_ref.shape[-1]

    # One f32 accumulator per group member, initialized with the bias (lane vector
    # broadcast over all output rows).
    accs = [jnp.broadcast_to(b_ref[k, :], (Hout, Wout, C)) for k in range(K)]

    # Static unrolled loop over the KH*KW taps (tiny). Each tap patch is loaded once
    # and reused for all K group members.
    for i in range(KH):
        for j in range(KW):
            p = (i % s) * s + (j % s)
            t = i * KW + j
            patch = x_ref[p,
                          i // s:i // s + Hout,
                          j // s:j // s + Wout,
                          :].astype(jnp.float32)          # (Hout, Wout, C)
            for k in range(K):
                # (C,) weight vector broadcasts along lanes over all output rows.
                accs[k] = accs[k] + w_ref[k, t, :] * patch

    for k in range(K):
        o_ref[k] = accs[k].astype(o_ref.dtype)


@functools.partial(jax.jit, static_argnames=("stride",))
def depthwise_conv2d(x, weight, bias, *, stride):
    """x: (B, C, H, W); weight: (OC, 1, KH, KW); bias: (OC,); padding=0, groups=C."""
    B, C, H, W = x.shape
    OC, _, KH, KW = weight.shape
    assert OC % C == 0, "out_channels must be a multiple of in_channels"
    K = OC // C
    s = int(stride)
    Hout = (H - KH) // s + 1
    Wout = (W - KW) // s + 1
    Hp = Hout + (KH - 1) // s
    Wp = Wout + (KW - 1) // s

    # --- layout glue (kept in x.dtype; one fused XLA copy under jit) -------------------
    xc = x[:, :, :min(H, s * Hp), :min(W, s * Wp)]
    pad_h = s * Hp - xc.shape[2]
    pad_w = s * Wp - xc.shape[3]
    xp = jnp.pad(xc, ((0, 0), (0, 0), (0, pad_h), (0, pad_w)))
    # (B, C, Hp, s, Wp, s) -> (B, di, dj, Hp, Wp, C) -> (B, s*s, Hp, Wp, C)
    x_split = xp.reshape(B, C, Hp, s, Wp, s).transpose(0, 3, 5, 2, 4, 1)
    x_split = x_split.reshape(B, s * s, Hp, Wp, C)

    # Weights / bias: channels-last lane vectors per group member, f32 in VMEM.
    # PyTorch grouped conv: output channel oc = c*K + k uses input channel c.
    w_arr = weight.reshape(C, K, KH * KW).transpose(1, 2, 0).astype(jnp.float32)  # (K, KH*KW, C)
    b_arr = bias.reshape(C, K).T.astype(jnp.float32)                              # (K, C)

    kernel = functools.partial(
        _dwconv_kernel, K=K, KH=KH, KW=KW, stride=s, Hout=Hout, Wout=Wout)

    out_cl = pl.pallas_call(
        kernel,
        out_shape=jax.ShapeDtypeStruct((B, K, Hout, Wout, C), x.dtype),
        grid=(B,),
        in_specs=[
            # Full weight / bias arrays resident in VMEM (constant block index -> no re-DMA).
            pl.BlockSpec((K, KH * KW, C), lambda b: (0, 0, 0)),
            pl.BlockSpec((K, C), lambda b: (0, 0)),
            # One whole unshuffled, channels-last plane per batch element.
            pl.BlockSpec((None, s * s, Hp, Wp, C), lambda b: (b, 0, 0, 0, 0)),
        ],
        out_specs=pl.BlockSpec((None, K, Hout, Wout, C), lambda b: (b, 0, 0, 0, 0)),
        compiler_params=pltpu.CompilerParams(
            dimension_semantics=("parallel",)),
    )(w_arr, b_arr, x_split)

    # Back to NCHW with PyTorch channel order oc = c*K + k.
    out = jnp.transpose(out_cl, (0, 4, 1, 2, 3)).reshape(B, OC, Hout, Wout)
    return out


if __name__ == "__main__":
    key = jax.random.PRNGKey(0)
    B, Cin, H, W = 2, 4, 16, 16
    Kmult = 2                    # out_channels = Kmult * in_channels
    OC = Kmult * Cin
    KH = KW = 3
    stride = 2                   # module default

    k1, k2, k3 = jax.random.split(key, 3)
    x = jax.random.normal(k1, (B, Cin, H, W), jnp.float32)

    # Deterministic Conv2d-style init: U(-1/sqrt(fan_in), 1/sqrt(fan_in)), fan_in = 1*KH*KW.
    fan_in = 1 * KH * KW
    bound = 1.0 / (fan_in ** 0.5)
    weight = jax.random.uniform(k2, (OC, 1, KH, KW), jnp.float32, -bound, bound)
    bias = jax.random.uniform(k3, (OC,), jnp.float32, -bound, bound)

    out = depthwise_conv2d(x, weight, bias, stride=stride)
    out = jax.block_until_ready(out)

    # Reference (plain JAX) to validate exact grouped depthwise-conv semantics.
    ref = jax.lax.conv_general_dilated(
        x, weight, window_strides=(stride, stride), padding="VALID",
        dimension_numbers=("NCHW", "OIHW", "NCHW"),
        feature_group_count=Cin) + bias[None, :, None, None]

    assert out.shape == (B, OC, (H - KH) // stride + 1, (W - KW) // stride + 1)
    assert jnp.allclose(out, ref, atol=1e-5, rtol=1e-5)
    print("KERNEL_OK")
</pallas_src>

<mosaic_0001>
module attributes {stable_mosaic.version = 11 : i64} {
  func.func @_dwconv_kernel(%arg0: i32, %arg1: memref<2x9x4xf32, #tpu.memory_space<vmem>>, %arg2: memref<2x4xf32, #tpu.memory_space<vmem>>, %arg3: memref<1x4x8x8x4xf32, #tpu.memory_space<vmem>>, %arg4: memref<1x2x7x7x4xf32, #tpu.memory_space<vmem>>) attributes {dimension_semantics = [#tpu.dimension_semantics<parallel>], iteration_bounds = array<i64: 2>, scalar_prefetch = 0 : i64, scratch_operands = 0 : i64, tpu.core_type = #tpu.core_type<tc>, window_params = [{pipeline_mode = #tpu.pipeline_mode<synchronous>, transform_indices = @transform_0, window_bounds = array<i64: 2, 9, 4>}, {pipeline_mode = #tpu.pipeline_mode<synchronous>, transform_indices = @transform_1, window_bounds = array<i64: 2, 4>}, {transform_indices = @transform_2, window_bounds = array<i64: 1, 4, 8, 8, 4>}, {transform_indices = @transform_3, window_bounds = array<i64: 1, 2, 7, 7, 4>}]} {
    %c0 = arith.constant 0 : index
    %c0_0 = arith.constant 0 : index
    %0 = vector.load %arg2[%c0, %c0_0] : memref<2x4xf32, #tpu.memory_space<vmem>>, vector<1x4xf32>
    %1 = vector.shape_cast %0 : vector<1x4xf32> to vector<4xf32>
    %2 = vector.shape_cast %1 : vector<4xf32> to vector<1x1x4xf32>
    %3 = vector.broadcast %2 : vector<1x1x4xf32> to vector<7x7x4xf32>
    %c1 = arith.constant 1 : index
    %c0_1 = arith.constant 0 : index
    %4 = vector.load %arg2[%c1, %c0_1] : memref<2x4xf32, #tpu.memory_space<vmem>>, vector<1x4xf32>
    %5 = vector.shape_cast %4 : vector<1x4xf32> to vector<4xf32>
    %6 = vector.shape_cast %5 : vector<4xf32> to vector<1x1x4xf32>
    %7 = vector.broadcast %6 : vector<1x1x4xf32> to vector<7x7x4xf32>
    %c0_2 = arith.constant 0 : index
    %c0_3 = arith.constant 0 : index
    %c0_4 = arith.constant 0 : index
    %c0_5 = arith.constant 0 : index
    %c0_6 = arith.constant 0 : index
    %8 = vector.load %arg3[%c0_2, %c0_3, %c0_4, %c0_5, %c0_6] : memref<1x4x8x8x4xf32, #tpu.memory_space<vmem>>, vector<1x1x7x7x4xf32>
    %9 = vector.shape_cast %8 : vector<1x1x7x7x4xf32> to vector<7x7x4xf32>
    %c0_7 = arith.constant 0 : index
    %c0_8 = arith.constant 0 : index
    %c0_9 = arith.constant 0 : index
    %10 = vector.load %arg1[%c0_7, %c0_8, %c0_9] : memref<2x9x4xf32, #tpu.memory_space<vmem>>, vector<1x1x4xf32>
    %11 = vector.shape_cast %10 : vector<1x1x4xf32> to vector<4xf32>
    %12 = vector.shape_cast %11 : vector<4xf32> to vector<1x1x4xf32>
    %13 = vector.broadcast %12 : vector<1x1x4xf32> to vector<7x7x4xf32>
    %14 = arith.mulf %13, %9 : vector<7x7x4xf32>
    %15 = arith.addf %3, %14 : vector<7x7x4xf32>
    %c1_10 = arith.constant 1 : index
    %c0_11 = arith.constant 0 : index
    %c0_12 = arith.constant 0 : index
    %16 = vector.load %arg1[%c1_10, %c0_11, %c0_12] : memref<2x9x4xf32, #tpu.memory_space<vmem>>, vector<1x1x4xf32>
    %17 = vector.shape_cast %16 : vector<1x1x4xf32> to vector<4xf32>
    %18 = vector.shape_cast %17 : vector<4xf32> to vector<1x1x4xf32>
    %19 = vector.broadcast %18 : vector<1x1x4xf32> to vector<7x7x4xf32>
    %20 = arith.mulf %19, %9 : vector<7x7x4xf32>
    %21 = arith.addf %7, %20 : vector<7x7x4xf32>
    %c0_13 = arith.constant 0 : index
    %c1_14 = arith.constant 1 : index
    %c0_15 = arith.constant 0 : index
    %c0_16 = arith.constant 0 : index
    %c0_17 = arith.constant 0 : index
    %22 = vector.load %arg3[%c0_13, %c1_14, %c0_15, %c0_16, %c0_17] : memref<1x4x8x8x4xf32, #tpu.memory_space<vmem>>, vector<1x1x7x7x4xf32>
    %23 = vector.shape_cast %22 : vector<1x1x7x7x4xf32> to vector<7x7x4xf32>
    %c0_18 = arith.constant 0 : index
    %c1_19 = arith.constant 1 : index
    %c0_20 = arith.constant 0 : index
    %24 = vector.load %arg1[%c0_18, %c1_19, %c0_20] : memref<2x9x4xf32, #tpu.memory_space<vmem>>, vector<1x1x4xf32>
    %25 = vector.shape_cast %24 : vector<1x1x4xf32> to vector<4xf32>
    %26 = vector.shape_cast %25 : vector<4xf32> to vector<1x1x4xf32>
    %27 = vector.broadcast %26 : vector<1x1x4xf32> to vector<7x7x4xf32>
    %28 = arith.mulf %27, %23 : vector<7x7x4xf32>
    %29 = arith.addf %15, %28 : vector<7x7x4xf32>
    %c1_21 = arith.constant 1 : index
    %c1_22 = arith.constant 1 : index
    %c0_23 = arith.constant 0 : index
    %30 = vector.load %arg1[%c1_21, %c1_22, %c0_23] : memref<2x9x4xf32, #tpu.memory_space<vmem>>, vector<1x1x4xf32>
    %31 = vector.shape_cast %30 : vector<1x1x4xf32> to vector<4xf32>
    %32 = vector.shape_cast %31 : vector<4xf32> to vector<1x1x4xf32>
    %33 = vector.broadcast %32 : vector<1x1x4xf32> to vector<7x7x4xf32>
    %34 = arith.mulf %33, %23 : vector<7x7x4xf32>
    %35 = arith.addf %21, %34 : vector<7x7x4xf32>
    %c0_24 = arith.constant 0 : index
    %c0_25 = arith.constant 0 : index
    %c0_26 = arith.constant 0 : index
    %c1_27 = arith.constant 1 : index
    %c0_28 = arith.constant 0 : index
    %36 = vector.load %arg3[%c0_24, %c0_25, %c0_26, %c1_27, %c0_28] : memref<1x4x8x8x4xf32, #tpu.memory_space<vmem>>, vector<1x1x7x7x4xf32>
    %37 = vector.shape_cast %36 : vector<1x1x7x7x4xf32> to vector<7x7x4xf32>
    %c0_29 = arith.constant 0 : index
    %c2 = arith.constant 2 : index
    %c0_30 = arith.constant 0 : index
    %38 = vector.load %arg1[%c0_29, %c2, %c0_30] : memref<2x9x4xf32, #tpu.memory_space<vmem>>, vector<1x1x4xf32>
    %39 = vector.shape_cast %38 : vector<1x1x4xf32> to vector<4xf32>
    %40 = vector.shape_cast %39 : vector<4xf32> to vector<1x1x4xf32>
    %41 = vector.broadcast %40 : vector<1x1x4xf32> to vector<7x7x4xf32>
    %42 = arith.mulf %41, %37 : vector<7x7x4xf32>
    %43 = arith.addf %29, %42 : vector<7x7x4xf32>
    %c1_31 = arith.constant 1 : index
    %c2_32 = arith.constant 2 : index
    %c0_33 = arith.constant 0 : index
    %44 = vector.load %arg1[%c1_31, %c2_32, %c0_33] : memref<2x9x4xf32, #tpu.memory_space<vmem>>, vector<1x1x4xf32>
    %45 = vector.shape_cast %44 : vector<1x1x4xf32> to vector<4xf32>
    %46 = vector.shape_cast %45 : vector<4xf32> to vector<1x1x4xf32>
    %47 = vector.broadcast %46 : vector<1x1x4xf32> to vector<7x7x4xf32>
    %48 = arith.mulf %47, %37 : vector<7x7x4xf32>
    %49 = arith.addf %35, %48 : vector<7x7x4xf32>
    %c0_34 = arith.constant 0 : index
    %c2_35 = arith.constant 2 : index
    %c0_36 = arith.constant 0 : index
    %c0_37 = arith.constant 0 : index
    %c0_38 = arith.constant 0 : index
    %50 = vector.load %arg3[%c0_34, %c2_35, %c0_36, %c0_37, %c0_38] : memref<1x4x8x8x4xf32, #tpu.memory_space<vmem>>, vector<1x1x7x7x4xf32>
    %51 = vector.shape_cast %50 : vector<1x1x7x7x4xf32> to vector<7x7x4xf32>
    %c0_39 = arith.constant 0 : index
    %c3 = arith.constant 3 : index
    %c0_40 = arith.constant 0 : index
    %52 = vector.load %arg1[%c0_39, %c3, %c0_40] : memref<2x9x4xf32, #tpu.memory_space<vmem>>, vector<1x1x4xf32>
    %53 = vector.shape_cast %52 : vector<1x1x4xf32> to vector<4xf32>
    %54 = vector.shape_cast %53 : vector<4xf32> to vector<1x1x4xf32>
    %55 = vector.broadcast %54 : vector<1x1x4xf32> to vector<7x7x4xf32>
    %56 = arith.mulf %55, %51 : vector<7x7x4xf32>
    %57 = arith.addf %43, %56 : vector<7x7x4xf32>
    %c1_41 = arith.constant 1 : index
    %c3_42 = arith.constant 3 : index
    %c0_43 = arith.constant 0 : index
    %58 = vector.load %arg1[%c1_41, %c3_42, %c0_43] : memref<2x9x4xf32, #tpu.memory_space<vmem>>, vector<1x1x4xf32>
    %59 = vector.shape_cast %58 : vector<1x1x4xf32> to vector<4xf32>
    %60 = vector.shape_cast %59 : vector<4xf32> to vector<1x1x4xf32>
    %61 = vector.broadcast %60 : vector<1x1x4xf32> to vector<7x7x4xf32>
    %62 = arith.mulf %61, %51 : vector<7x7x4xf32>
    %63 = arith.addf %49, %62 : vector<7x7x4xf32>
    %c0_44 = arith.constant 0 : index
    %c3_45 = arith.constant 3 : index
    %c0_46 = arith.constant 0 : index
    %c0_47 = arith.constant 0 : index
    %c0_48 = arith.constant 0 : index
    %64 = vector.load %arg3[%c0_44, %c3_45, %c0_46, %c0_47, %c0_48] : memref<1x4x8x8x4xf32, #tpu.memory_space<vmem>>, vector<1x1x7x7x4xf32>
    %65 = vector.shape_cast %64 : vector<1x1x7x7x4xf32> to vector<7x7x4xf32>
    %c0_49 = arith.constant 0 : index
    %c4 = arith.constant 4 : index
    %c0_50 = arith.constant 0 : index
    %66 = vector.load %arg1[%c0_49, %c4, %c0_50] : memref<2x9x4xf32, #tpu.memory_space<vmem>>, vector<1x1x4xf32>
    %67 = vector.shape_cast %66 : vector<1x1x4xf32> to vector<4xf32>
    %68 = vector.shape_cast %67 : vector<4xf32> to vector<1x1x4xf32>
    %69 = vector.broadcast %68 : vector<1x1x4xf32> to vector<7x7x4xf32>
    %70 = arith.mulf %69, %65 : vector<7x7x4xf32>
    %71 = arith.addf %57, %70 : vector<7x7x4xf32>
    %c1_51 = arith.constant 1 : index
    %c4_52 = arith.constant 4 : index
    %c0_53 = arith.constant 0 : index
    %72 = vector.load %arg1[%c1_51, %c4_52, %c0_53] : memref<2x9x4xf32, #tpu.memory_space<vmem>>, vector<1x1x4xf32>
    %73 = vector.shape_cast %72 : vector<1x1x4xf32> to vector<4xf32>
    %74 = vector.shape_cast %73 : vector<4xf32> to vector<1x1x4xf32>
    %75 = vector.broadcast %74 : vector<1x1x4xf32> to vector<7x7x4xf32>
    %76 = arith.mulf %75, %65 : vector<7x7x4xf32>
    %77 = arith.addf %63, %76 : vector<7x7x4xf32>
    %c0_54 = arith.constant 0 : index
    %c2_55 = arith.constant 2 : index
    %c0_56 = arith.constant 0 : index
    %c1_57 = arith.constant 1 : index
    %c0_58 = arith.constant 0 : index
    %78 = vector.load %arg3[%c0_54, %c2_55, %c0_56, %c1_57, %c0_58] : memref<1x4x8x8x4xf32, #tpu.memory_space<vmem>>, vector<1x1x7x7x4xf32>
    %79 = vector.shape_cast %78 : vector<1x1x7x7x4xf32> to vector<7x7x4xf32>
    %c0_59 = arith.constant 0 : index
    %c5 = arith.constant 5 : index
    %c0_60 = arith.constant 0 : index
    %80 = vector.load %arg1[%c0_59, %c5, %c0_60] : memref<2x9x4xf32, #tpu.memory_space<vmem>>, vector<1x1x4xf32>
    %81 = vector.shape_cast %80 : vector<1x1x4xf32> to vector<4xf32>
    %82 = vector.shape_cast %81 : vector<4xf32> to vector<1x1x4xf32>
    %83 = vector.broadcast %82 : vector<1x1x4xf32> to vector<7x7x4xf32>
    %84 = arith.mulf %83, %79 : vector<7x7x4xf32>
    %85 = arith.addf %71, %84 : vector<7x7x4xf32>
    %c1_61 = arith.constant 1 : index
    %c5_62 = arith.constant 5 : index
    %c0_63 = arith.constant 0 : index
    %86 = vector.load %arg1[%c1_61, %c5_62, %c0_63] : memref<2x9x4xf32, #tpu.memory_space<vmem>>, vector<1x1x4xf32>
    %87 = vector.shape_cast %86 : vector<1x1x4xf32> to vector<4xf32>
    %88 = vector.shape_cast %87 : vector<4xf32> to vector<1x1x4xf32>
    %89 = vector.broadcast %88 : vector<1x1x4xf32> to vector<7x7x4xf32>
    %90 = arith.mulf %89, %79 : vector<7x7x4xf32>
    %91 = arith.addf %77, %90 : vector<7x7x4xf32>
    %c0_64 = arith.constant 0 : index
    %c0_65 = arith.constant 0 : index
    %c1_66 = arith.constant 1 : index
    %c0_67 = arith.constant 0 : index
    %c0_68 = arith.constant 0 : index
    %92 = vector.load %arg3[%c0_64, %c0_65, %c1_66, %c0_67, %c0_68] : memref<1x4x8x8x4xf32, #tpu.memory_space<vmem>>, vector<1x1x7x7x4xf32>
    %93 = vector.shape_cast %92 : vector<1x1x7x7x4xf32> to vector<7x7x4xf32>
    %c0_69 = arith.constant 0 : index
    %c6 = arith.constant 6 : index
    %c0_70 = arith.constant 0 : index
    %94 = vector.load %arg1[%c0_69, %c6, %c0_70] : memref<2x9x4xf32, #tpu.memory_space<vmem>>, vector<1x1x4xf32>
    %95 = vector.shape_cast %94 : vector<1x1x4xf32> to vector<4xf32>
    %96 = vector.shape_cast %95 : vector<4xf32> to vector<1x1x4xf32>
    %97 = vector.broadcast %96 : vector<1x1x4xf32> to vector<7x7x4xf32>
    %98 = arith.mulf %97, %93 : vector<7x7x4xf32>
    %99 = arith.addf %85, %98 : vector<7x7x4xf32>
    %c1_71 = arith.constant 1 : index
    %c6_72 = arith.constant 6 : index
    %c0_73 = arith.constant 0 : index
    %100 = vector.load %arg1[%c1_71, %c6_72, %c0_73] : memref<2x9x4xf32, #tpu.memory_space<vmem>>, vector<1x1x4xf32>
    %101 = vector.shape_cast %100 : vector<1x1x4xf32> to vector<4xf32>
    %102 = vector.shape_cast %101 : vector<4xf32> to vector<1x1x4xf32>
    %103 = vector.broadcast %102 : vector<1x1x4xf32> to vector<7x7x4xf32>
    %104 = arith.mulf %103, %93 : vector<7x7x4xf32>
    %105 = arith.addf %91, %104 : vector<7x7x4xf32>
    %c0_74 = arith.constant 0 : index
    %c1_75 = arith.constant 1 : index
    %c1_76 = arith.constant 1 : index
    %c0_77 = arith.constant 0 : index
    %c0_78 = arith.constant 0 : index
    %106 = vector.load %arg3[%c0_74, %c1_75, %c1_76, %c0_77, %c0_78] : memref<1x4x8x8x4xf32, #tpu.memory_space<vmem>>, vector<1x1x7x7x4xf32>
    %107 = vector.shape_cast %106 : vector<1x1x7x7x4xf32> to vector<7x7x4xf32>
    %c0_79 = arith.constant 0 : index
    %c7 = arith.constant 7 : index
    %c0_80 = arith.constant 0 : index
    %108 = vector.load %arg1[%c0_79, %c7, %c0_80] : memref<2x9x4xf32, #tpu.memory_space<vmem>>, vector<1x1x4xf32>
    %109 = vector.shape_cast %108 : vector<1x1x4xf32> to vector<4xf32>
    %110 = vector.shape_cast %109 : vector<4xf32> to vector<1x1x4xf32>
    %111 = vector.broadcast %110 : vector<1x1x4xf32> to vector<7x7x4xf32>
    %112 = arith.mulf %111, %107 : vector<7x7x4xf32>
    %113 = arith.addf %99, %112 : vector<7x7x4xf32>
    %c1_81 = arith.constant 1 : index
    %c7_82 = arith.constant 7 : index
    %c0_83 = arith.constant 0 : index
    %114 = vector.load %arg1[%c1_81, %c7_82, %c0_83] : memref<2x9x4xf32, #tpu.memory_space<vmem>>, vector<1x1x4xf32>
    %115 = vector.shape_cast %114 : vector<1x1x4xf32> to vector<4xf32>
    %116 = vector.shape_cast %115 : vector<4xf32> to vector<1x1x4xf32>
    %117 = vector.broadcast %116 : vector<1x1x4xf32> to vector<7x7x4xf32>
    %118 = arith.mulf %117, %107 : vector<7x7x4xf32>
    %119 = arith.addf %105, %118 : vector<7x7x4xf32>
    %c0_84 = arith.constant 0 : index
    %c0_85 = arith.constant 0 : index
    %c1_86 = arith.constant 1 : index
    %c1_87 = arith.constant 1 : index
    %c0_88 = arith.constant 0 : index
    %120 = vector.load %arg3[%c0_84, %c0_85, %c1_86, %c1_87, %c0_88] : memref<1x4x8x8x4xf32, #tpu.memory_space<vmem>>, vector<1x1x7x7x4xf32>
    %121 = vector.shape_cast %120 : vector<1x1x7x7x4xf32> to vector<7x7x4xf32>
    %c0_89 = arith.constant 0 : index
    %c8 = arith.constant 8 : index
    %c0_90 = arith.constant 0 : index
    %122 = vector.load %arg1[%c0_89, %c8, %c0_90] : memref<2x9x4xf32, #tpu.memory_space<vmem>>, vector<1x1x4xf32>
    %123 = vector.shape_cast %122 : vector<1x1x4xf32> to vector<4xf32>
    %124 = vector.shape_cast %123 : vector<4xf32> to vector<1x1x4xf32>
    %125 = vector.broadcast %124 : vector<1x1x4xf32> to vector<7x7x4xf32>
    %126 = arith.mulf %125, %121 : vector<7x7x4xf32>
    %127 = arith.addf %113, %126 : vector<7x7x4xf32>
    %c1_91 = arith.constant 1 : index
    %c8_92 = arith.constant 8 : index
    %c0_93 = arith.constant 0 : index
    %128 = vector.load %arg1[%c1_91, %c8_92, %c0_93] : memref<2x9x4xf32, #tpu.memory_space<vmem>>, vector<1x1x4xf32>
    %129 = vector.shape_cast %128 : vector<1x1x4xf32> to vector<4xf32>
    %130 = vector.shape_cast %129 : vector<4xf32> to vector<1x1x4xf32>
    %131 = vector.broadcast %130 : vector<1x1x4xf32> to vector<7x7x4xf32>
    %132 = arith.mulf %131, %121 : vector<7x7x4xf32>
    %133 = arith.addf %119, %132 : vector<7x7x4xf32>
    %c0_94 = arith.constant 0 : index
    %c0_95 = arith.constant 0 : index
    %c0_96 = arith.constant 0 : index
    %c0_97 = arith.constant 0 : index
    %c0_98 = arith.constant 0 : index
    %134 = vector.load %arg4[%c0_94, %c0_95, %c0_96, %c0_97, %c0_98] : memref<1x2x7x7x4xf32, #tpu.memory_space<vmem>>, vector<1x1x7x7x4xf32>
    %135 = vector.shape_cast %134 : vector<1x1x7x7x4xf32> to vector<7x7x4xf32>
    %136 = vector.shape_cast %127 : vector<7x7x4xf32> to vector<1x1x7x7x4xf32>
    tpu.vector_store %arg4[%c0_94, %c0_95, %c0_96, %c0_97, %c0_98], %136 {strides = array<i32>} : memref<1x2x7x7x4xf32, #tpu.memory_space<vmem>>, vector<1x1x7x7x4xf32>,
    %c0_99 = arith.constant 0 : index
    %c1_100 = arith.constant 1 : index
    %c0_101 = arith.constant 0 : index
    %c0_102 = arith.constant 0 : index
    %c0_103 = arith.constant 0 : index
    %137 = vector.load %arg4[%c0_99, %c1_100, %c0_101, %c0_102, %c0_103] : memref<1x2x7x7x4xf32, #tpu.memory_space<vmem>>, vector<1x1x7x7x4xf32>
    %138 = vector.shape_cast %137 : vector<1x1x7x7x4xf32> to vector<7x7x4xf32>
    %139 = vector.shape_cast %133 : vector<7x7x4xf32> to vector<1x1x7x7x4xf32>
    tpu.vector_store %arg4[%c0_99, %c1_100, %c0_101, %c0_102, %c0_103], %139 {strides = array<i32>} : memref<1x2x7x7x4xf32, #tpu.memory_space<vmem>>, vector<1x1x7x7x4xf32>,
    return
  }
  func.func @transform_0(%arg0: i32) -> (i32, i32, i32) {
    %c0_i32 = arith.constant 0 : i32
    %c0_i32_0 = arith.constant 0 : i32
    %c0_i32_1 = arith.constant 0 : i32
    %c0_i32_2 = arith.constant 0 : i32
    return %c0_i32, %c0_i32_0, %c0_i32_1 : i32, i32, i32
  }
  func.func @transform_1(%arg0: i32) -> (i32, i32) {
    %c0_i32 = arith.constant 0 : i32
    %c0_i32_0 = arith.constant 0 : i32
    %c0_i32_1 = arith.constant 0 : i32
    return %c0_i32, %c0_i32_0 : i32, i32
  }
  func.func @transform_2(%arg0: i32) -> (i32, i32, i32, i32, i32) {
    %c0_i32 = arith.constant 0 : i32
    %c0_i32_0 = arith.constant 0 : i32
    %c0_i32_1 = arith.constant 0 : i32
    %c0_i32_2 = arith.constant 0 : i32
    %c0_i32_3 = arith.constant 0 : i32
    return %arg0, %c0_i32, %c0_i32_0, %c0_i32_1, %c0_i32_2 : i32, i32, i32, i32, i32
  }
  func.func @transform_3(%arg0: i32) -> (i32, i32, i32, i32, i32) {
    %c0_i32 = arith.constant 0 : i32
    %c0_i32_0 = arith.constant 0 : i32
    %c0_i32_1 = arith.constant 0 : i32
    %c0_i32_2 = arith.constant 0 : i32
    %c0_i32_3 = arith.constant 0 : i32
    return %arg0, %c0_i32, %c0_i32_0, %c0_i32_1, %c0_i32_2 : i32, i32, i32, i32, i32
  }
}

</mosaic_0001>

<llo_original>
// kernel: depthwise_conv2d.1
$region0: #{depthwise_conv2d.1}
  #allocation0 [shape = 'u32[]', space=smem, size = 0x4, offset = 0x4, fixed_abs, tag = 'smem constant byte address 0x4 - core index']
  #allocation1 [shape = 'u32[144,128]{1,0:T(1,128)}', space=vmem, size = 0x12000, scoped, tag = 'internal scratch']
  %s0 = inlined_call_operand.vmem [shape: f32[2,9,4], index: 0, kind: input, shape index: {}]
  %s1 = inlined_call_operand.vmem [shape: f32[2,4], index: 1, kind: input, shape index: {}]
  %s2 = inlined_call_operand.vmem [shape: f32[2,4,8,8,4], index: 2, kind: input, shape index: {}]
  %s3 = inlined_call_operand.vmem [shape: f32[2,2,7,7,4], index: 3, kind: output, shape index: {}]
  %s4 = sld [smem:[#allocation0]]
  $region45: #{depthwise_conv2d.1} parent=0
    _
  %s6 = ssub.s32 1, %s4
  %s7 = scalar_select 0, %s6, %s4
  loop: start=0, step=1, limit=4
  $region2: #{depthwise_conv2d.1} parent=0 // loop_pre_header
    _
  $region3: #{depthwise_conv2d.1} parent=0 // loop_header
    %s9 = sphi 0, %s13
    %p10 = scmp.ge.s32.totalorder %s9, 4
    %s17 = sphi 0, %s17
    %s19 = sphi 0, %s17
    %s20 = sphi 0, %s19
    %s34 = sphi 0, %s20
    %s38 = sphi 0, %s38
    %s40 = sphi 0, %s38
    %s41 = sphi 0, %s40
    %s55 = sphi 0, %s41
    %s61 = sphi 0, %s63
    %s64 = sphi 0, %s61
    %s65 = sphi 0, %s64
    %s81 = sphi 0, %s65
    %s87 = sphi 0, %s89
    %s90 = sphi 0, %s87
    %s91 = sphi 0, %s90
    %s107 = sphi 0, %s91
  $region4: #{depthwise_conv2d.1} parent=0 // loop_header_branch
    %12 = sbr.rel (%p10) target = $region8
  $region5: #{depthwise_conv2d.1} parent=0 // loop_body
    %s14 = ssub.s32 %s9, 1
    %s15 = ssub.s32 %s9, 2
    %s16 = sadd.s32 %s9, 1
    %s18 = sadd.s32 %s17, 1
    %p21 = scmp.eq.s32.totalorder %s9, 1
    %p22 = scmp.ne.s32.totalorder %s17, %s19
    %p23 = scmp.eq.s32.totalorder %s9, 0
    %p24 = por %p22, %p23
    %p25 = scmp.ne.s32.totalorder %s17, %s19
    %p26 = scmp.eq.s32.totalorder %s14, 1
    %p27 = por %p25, %p26
    %p28 = scmp.ne.s32.totalorder %s19, %s20
    %p29 = scmp.eq.s32.totalorder %s14, 0
    %p30 = por %p28, %p29
    %p31 = scmp.ne.s32.totalorder %s19, %s20
    %p32 = scmp.eq.s32.totalorder %s15, 1
    %p33 = por %p31, %p32
    %p35 = scmp.ne.s32.totalorder %s20, %s34
    %p36 = scmp.eq.s32.totalorder %s15, 0
    %p37 = por %p35, %p36
    %s39 = sadd.s32 %s38, 1
    %p42 = scmp.eq.s32.totalorder %s9, 1
    %p43 = scmp.ne.s32.totalorder %s38, %s40
    %p44 = scmp.eq.s32.totalorder %s9, 0
    %p45 = por %p43, %p44
    %p46 = scmp.ne.s32.totalorder %s38, %s40
    %p47 = scmp.eq.s32.totalorder %s14, 1
    %p48 = por %p46, %p47
    %p49 = scmp.ne.s32.totalorder %s40, %s41
    %p50 = scmp.eq.s32.totalorder %s14, 0
    %p51 = por %p49, %p50
    %p52 = scmp.ne.s32.totalorder %s40, %s41
    %p53 = scmp.eq.s32.totalorder %s15, 1
    %p54 = por %p52, %p53
    %p56 = scmp.ne.s32.totalorder %s41, %s55
    %p57 = scmp.eq.s32.totalorder %s15, 0
    %p58 = por %p56, %p57
    %s59 = ssub.s32 %s9, %s16
    %p60 = scmp.eq.s32.totalorder %s59, 0
    %s62 = sadd.s32 %s61, 1
    %s63 = scalar_select %p60, %s61, %s62
    %p66 = pneg %p60
    %p67 = scmp.eq.s32.totalorder %s9, 1
    %p68 = por %p66, %p67
    %p69 = scmp.ne.s32.totalorder %s61, %s64
    %p70 = scmp.eq.s32.totalorder %s9, 0
    %p71 = por %p69, %p70
    %p72 = scmp.ne.s32.totalorder %s61, %s64
    %p73 = scmp.eq.s32.totalorder %s14, 1
    %p74 = por %p72, %p73
    %p75 = scmp.ne.s32.totalorder %s64, %s65
    %p76 = scmp.eq.s32.totalorder %s14, 0
    %p77 = por %p75, %p76
    %p78 = scmp.ne.s32.totalorder %s64, %s65
    %p79 = scmp.eq.s32.totalorder %s15, 1
    %p80 = por %p78, %p79
    %p82 = scmp.ne.s32.totalorder %s65, %s81
    %p83 = scmp.eq.s32.totalorder %s15, 0
    %p84 = por %p82, %p83
    %s85 = ssub.s32 %s9, %s16
    %p86 = scmp.eq.s32.totalorder %s85, 0
    %s88 = sadd.s32 %s87, 1
    %s89 = scalar_select %p86, %s87, %s88
    %p92 = pneg %p86
    %p93 = scmp.eq.s32.totalorder %s9, 1
    %p94 = por %p92, %p93
    %p95 = scmp.ne.s32.totalorder %s87, %s90
    %p96 = scmp.eq.s32.totalorder %s9, 0
    %p97 = por %p95, %p96
    %p98 = scmp.ne.s32.totalorder %s87, %s90
    %p99 = scmp.eq.s32.totalorder %s14, 1
    %p100 = por %p98, %p99
    %p101 = scmp.ne.s32.totalorder %s90, %s91
    %p102 = scmp.eq.s32.totalorder %s14, 0
    %p103 = por %p101, %p102
    %p104 = scmp.ne.s32.totalorder %s90, %s91
    %p105 = scmp.eq.s32.totalorder %s15, 1
    %p106 = por %p104, %p105
    %p108 = scmp.ne.s32.totalorder %s91, %s107
    %p109 = scmp.eq.s32.totalorder %s15, 0
    %p110 = por %p108, %p109
    %p111 = scmp.le.s32.totalorder 1, %s9
    %p112 = scmp.lt.s32.totalorder %s9, 3
    %p113 = pnand %p111, %p112
    %p114 = pneg %p113
    // Predicated region
    $region9: #{depthwise_conv2d.1} parent=5 // pred_check
      _
    $region10: #{depthwise_conv2d.1} parent=5 // pred_check_branch
      %116 = sbr.rel (%p113) target = $region12
    $region11: #{depthwise_conv2d.1} parent=5 // pred_region
      %s117 = ssub.s32 %s9, 1
      // Predicated region
      $region13: #{depthwise_conv2d.1} parent=11 // pred_check
        %p118 = pneg %p30
      $region14: #{depthwise_conv2d.1} parent=11 // pred_check_branch
        %120 = sbr.rel (%p118) target = $region16
      $region15: #{depthwise_conv2d.1} parent=11 // pred_region
        _
      $region16: #{depthwise_conv2d.1} parent=11 // pred_fallthru
        _
      // Predicated region
      $region17: #{depthwise_conv2d.1} parent=11 // pred_check
        %p121 = pneg %p51
      $region18: #{depthwise_conv2d.1} parent=11 // pred_check_branch
        %123 = sbr.rel (%p121) target = $region20
      $region19: #{depthwise_conv2d.1} parent=11 // pred_region
        _
      $region20: #{depthwise_conv2d.1} parent=11 // pred_fallthru
        _
    $region12: #{depthwise_conv2d.1} parent=5 // pred_fallthru
      _
    %p124 = scmp.lt.s32.totalorder %s9, 2
    // Predicated region
    $region21: #{depthwise_conv2d.1} parent=5 // pred_check
      %p125 = pneg %p124
    $region22: #{depthwise_conv2d.1} parent=5 // pred_check_branch
      %127 = sbr.rel (%p125) target = $region24
    $region23: #{depthwise_conv2d.1} parent=5 // pred_region
      // Predicated region
      $region25: #{depthwise_conv2d.1} parent=23 // pred_check
        %p128 = pneg %p71
      $region26: #{depthwise_conv2d.1} parent=23 // pred_check_branch
        %130 = sbr.rel (%p128) target = $region28
      $region27: #{depthwise_conv2d.1} parent=23 // pred_region
        %p131 = scmp.lt.s32.totalorder %s9, 1
        %s132 = scalar_select %p131, %s9, 1
        %s133 = smul.addr %s132, 32
        %s134 = smul.addr %s133, 8
        %s135 = scalar_lea.vmem %s2, %s134
      $region28: #{depthwise_conv2d.1} parent=23 // pred_fallthru
        _
    $region24: #{depthwise_conv2d.1} parent=5 // pred_fallthru
      _
    %p136 = scmp.le.s32.totalorder 1, %s9
    %p137 = scmp.lt.s32.totalorder %s9, 3
    %p138 = pnand %p136, %p137
    %p139 = pneg %p138
    // Predicated region
    $region29: #{depthwise_conv2d.1} parent=5 // pred_check
      _
    $region30: #{depthwise_conv2d.1} parent=5 // pred_check_branch
      %141 = sbr.rel (%p138) target = $region32
    $region31: #{depthwise_conv2d.1} parent=5 // pred_region
      %s142 = ssub.s32 %s9, 1
      %p143 = pneg %p30
      %p144 = pneg %p27
      %p145 = pneg %p51
      %p146 = pneg %p48
      %p147 = scmp.lt.s32.totalorder %s14, 1
      %s148 = scalar_select %p147, %s14, 1
      %s149 = smul.addr %s148, 32
      %s150 = smul.addr %s149, 8
      %s151 = scalar_lea.vmem %s2, %s150
      %p152 = pneg %p77
      %p153 = pneg %p74
      %p154 = pneg %p103
      %p155 = pneg %p100
      %p156 = scmp.lt.s32.totalorder %s14, 1
      %s157 = scalar_select %p156, %s14, 1
      %s158 = smul.addr %s157, 14
      %s159 = smul.addr %s158, 8
      %s160 = scalar_lea.vmem %s3, %s159
      %p161 = scmp.lt.s32.totalorder %s14, 1
      %s162 = scalar_select %p161, %s14, 1
      %s163 = smul.addr %s162, 32
      %s164 = smul.addr %s163, 8
      %s165 = scalar_lea.vmem %s2, %s164
      %p166 = scmp.lt.s32.totalorder %s14, 1
      %s167 = scalar_select %p166, %s14, 1
      %s168 = smul.addr %s167, 14
      %s169 = smul.addr %s168, 8
      %s170 = scalar_lea.vmem %s3, %s169
      %v171 = vld [vmem:[%s1] sm:$0x1]
      %v172 = vlaneseq
      %v173 = vshrl.u32 %v172, 7
      %v174 = vsub.s32 0, %v173
      %v175 = vrot.slane %v171, %v174
      %v176 = vld [vmem:[%s1 + $0x1] sm:$0x1]
      %v177 = vlaneseq
      %v178 = vshrl.u32 %v177, 7
      %v179 = vsub.s32 0, %v178
      %v180 = vrot.slane %v176, %v179
      %v181 = vld [vmem:[%s165] sm:$0x7f]
      %v182 = vld [vmem:[%s165 + $0x8] sm:$0x7f]
      %v183 = vld [vmem:[%s165 + $0x10] sm:$0x7f]
      %v184 = vld [vmem:[%s165 + $0x18] sm:$0x7f]
      %v185 = vld [vmem:[%s165 + $0x20] sm:$0x7f]
      %v186 = vld [vmem:[%s165 + $0x28] sm:$0x7f]
      %v187 = vld [vmem:[%s165 + $0x30] sm:$0x7f]
      %v188 = vld [vmem:[%s0] sm:$0x1]
      %v189 = vlaneseq
      %v190 = vshrl.u32 %v189, 7
      %v191 = vsub.s32 0, %v190
      %v192 = vrot.slane %v188, %v191
      %v193 = vmul.f32 %v192, %v181
      %v194 = vmul.f32 %v192, %v182
      %v195 = vmul.f32 %v192, %v183
      %v196 = vmul.f32 %v192, %v184
      %v197 = vmul.f32 %v192, %v185
      %v198 = vmul.f32 %v192, %v186
      %v199 = vmul.f32 %v192, %v187
      %v200 = vadd.f32 %v175, %v193
      %v201 = vadd.f32 %v175, %v194
      %v202 = vadd.f32 %v175, %v195
      %v203 = vadd.f32 %v175, %v196
      %v204 = vadd.f32 %v175, %v197
      %v205 = vadd.f32 %v175, %v198
      %v206 = vadd.f32 %v175, %v199
      %s207 = scalar_lea.vmem %s0, 16
      %v208 = vld [vmem:[%s207] sm:$0x1]
      %v209 = vlaneseq
      %v210 = vshrl.u32 %v209, 7
      %v211 = vsub.s32 0, %v210
      %v212 = vrot.slane %v208, %v211
      %v213 = vmul.f32 %v212, %v181
      %v214 = vmul.f32 %v212, %v182
      %v215 = vmul.f32 %v212, %v183
      %v216 = vmul.f32 %v212, %v184
      %v217 = vmul.f32 %v212, %v185
      %v218 = vmul.f32 %v212, %v186
      %v219 = vmul.f32 %v212, %v187
      %v220 = vadd.f32 %v180, %v213
      %v221 = vadd.f32 %v180, %v214
      %v222 = vadd.f32 %v180, %v215
      %v223 = vadd.f32 %v180, %v216
      %v224 = vadd.f32 %v180, %v217
      %v225 = vadd.f32 %v180, %v218
      %v226 = vadd.f32 %v180, %v219
      %s227 = scalar_lea.vmem %s165, 64
      %v228 = vld [vmem:[%s227] sm:$0x7f]
      %v229 = vld [vmem:[%s227 + $0x8] sm:$0x7f]
      %v230 = vld [vmem:[%s227 + $0x10] sm:$0x7f]
      %v231 = vld [vmem:[%s227 + $0x18] sm:$0x7f]
      %v232 = vld [vmem:[%s227 + $0x20] sm:$0x7f]
      %v233 = vld [vmem:[%s227 + $0x28] sm:$0x7f]
      %v234 = vld [vmem:[%s227 + $0x30] sm:$0x7f]
      %v235 = vld [vmem:[%s0 + $0x1] sm:$0x1]
      %v236 = vlaneseq
      %v237 = vshrl.u32 %v236, 7
      %v238 = vsub.s32 0, %v237
      %v239 = vrot.slane %v235, %v238
      %v240 = vmul.f32 %v239, %v228
      %v241 = vmul.f32 %v239, %v229
      %v242 = vmul.f32 %v239, %v230
      %v243 = vmul.f32 %v239, %v231
      %v244 = vmul.f32 %v239, %v232
      %v245 = vmul.f32 %v239, %v233
      %v246 = vmul.f32 %v239, %v234
      %v247 = vadd.f32 %v200, %v240
      %v248 = vadd.f32 %v201, %v241
      %v249 = vadd.f32 %v202, %v242
      %v250 = vadd.f32 %v203, %v243
      %v251 = vadd.f32 %v204, %v244
      %v252 = vadd.f32 %v205, %v245
      %v253 = vadd.f32 %v206, %v246
      %v254 = vld [vmem:[%s207 + $0x1] sm:$0x1]
      %v255 = vlaneseq
      %v256 = vshrl.u32 %v255, 7
      %v257 = vsub.s32 0, %v256
      %v258 = vrot.slane %v254, %v257
      %v259 = vmul.f32 %v258, %v228
      %v260 = vmul.f32 %v258, %v229
      %v261 = vmul.f32 %v258, %v230
      %v262 = vmul.f32 %v258, %v231
      %v263 = vmul.f32 %v258, %v232
      %v264 = vmul.f32 %v258, %v233
      %v265 = vmul.f32 %v258, %v234
      %v266 = vadd.f32 %v220, %v259
      %v267 = vadd.f32 %v221, %v260
      %v268 = vadd.f32 %v222, %v261
      %v269 = vadd.f32 %v223, %v262
      %v270 = vadd.f32 %v224, %v263
      %v271 = vadd.f32 %v225, %v264
      %v272 = vadd.f32 %v226, %v265
      %v273 = vld [vmem:[%s165 + $0x1] sm:$0x7f]
      %v274 = vld [vmem:[%s165 + $0x9] sm:$0x7f]
      %v275 = vld [vmem:[%s165 + $0x11] sm:$0x7f]
      %v276 = vld [vmem:[%s165 + $0x19] sm:$0x7f]
      %v277 = vld [vmem:[%s165 + $0x21] sm:$0x7f]
      %v278 = vld [vmem:[%s165 + $0x29] sm:$0x7f]
      %v279 = vld [vmem:[%s165 + $0x31] sm:$0x7f]
      %v280 = vld [vmem:[%s0 + $0x2] sm:$0x1]
      %v281 = vlaneseq
      %v282 = vshrl.u32 %v281, 7
      %v283 = vsub.s32 0, %v282
      %v284 = vrot.slane %v280, %v283
      %v285 = vmul.f32 %v284, %v273
      %v286 = vmul.f32 %v284, %v274
      %v287 = vmul.f32 %v284, %v275
      %v288 = vmul.f32 %v284, %v276
      %v289 = vmul.f32 %v284, %v277
      %v290 = vmul.f32 %v284, %v278
      %v291 = vmul.f32 %v284, %v279
      %v292 = vadd.f32 %v247, %v285
      %v293 = vadd.f32 %v248, %v286
      %v294 = vadd.f32 %v249, %v287
      %v295 = vadd.f32 %v250, %v288
      %v296 = vadd.f32 %v251, %v289
      %v297 = vadd.f32 %v252, %v290
      %v298 = vadd.f32 %v253, %v291
      %v299 = vld [vmem:[%s207 + $0x2] sm:$0x1]
      %v300 = vlaneseq
      %v301 = vshrl.u32 %v300, 7
      %v302 = vsub.s32 0, %v301
      %v303 = vrot.slane %v299, %v302
      %v304 = vmul.f32 %v303, %v273
      %v305 = vmul.f32 %v303, %v274
      %v306 = vmul.f32 %v303, %v275
      %v307 = vmul.f32 %v303, %v276
      %v308 = vmul.f32 %v303, %v277
      %v309 = vmul.f32 %v303, %v278
      %v310 = vmul.f32 %v303, %v279
      %v311 = vadd.f32 %v266, %v304
      %v312 = vadd.f32 %v267, %v305
      %v313 = vadd.f32 %v268, %v306
      %v314 = vadd.f32 %v269, %v307
      %v315 = vadd.f32 %v270, %v308
      %v316 = vadd.f32 %v271, %v309
      %v317 = vadd.f32 %v272, %v310
      %s318 = scalar_lea.vmem %s165, 128
      %v319 = vld [vmem:[%s318] sm:$0x7f]
      %v320 = vld [vmem:[%s318 + $0x8] sm:$0x7f]
      %v321 = vld [vmem:[%s318 + $0x10] sm:$0x7f]
      %v322 = vld [vmem:[%s318 + $0x18] sm:$0x7f]
      %v323 = vld [vmem:[%s318 + $0x20] sm:$0x7f]
      %v324 = vld [vmem:[%s318 + $0x28] sm:$0x7f]
      %v325 = vld [vmem:[%s318 + $0x30] sm:$0x7f]
      %v326 = vld [vmem:[%s0 + $0x3] sm:$0x1]
      %v327 = vlaneseq
      %v328 = vshrl.u32 %v327, 7
      %v329 = vsub.s32 0, %v328
      %v330 = vrot.slane %v326, %v329
      %v331 = vmul.f32 %v330, %v319
      %v332 = vmul.f32 %v330, %v320
      %v333 = vmul.f32 %v330, %v321
      %v334 = vmul.f32 %v330, %v322
      %v335 = vmul.f32 %v330, %v323
      %v336 = vmul.f32 %v330, %v324
      %v337 = vmul.f32 %v330, %v325
      %v338 = vadd.f32 %v292, %v331
      %v339 = vadd.f32 %v293, %v332
      %v340 = vadd.f32 %v294, %v333
      %v341 = vadd.f32 %v295, %v334
      %v342 = vadd.f32 %v296, %v335
      %v343 = vadd.f32 %v297, %v336
      %v344 = vadd.f32 %v298, %v337
      %v345 = vld [vmem:[%s207 + $0x3] sm:$0x1]
      %v346 = vlaneseq
      %v347 = vshrl.u32 %v346, 7
      %v348 = vsub.s32 0, %v347
      %v349 = vrot.slane %v345, %v348
      %v350 = vmul.f32 %v349, %v319
      %v351 = vmul.f32 %v349, %v320
      %v352 = vmul.f32 %v349, %v321
      %v353 = vmul.f32 %v349, %v322
      %v354 = vmul.f32 %v349, %v323
      %v355 = vmul.f32 %v349, %v324
      %v356 = vmul.f32 %v349, %v325
      %v357 = vadd.f32 %v311, %v350
      %v358 = vadd.f32 %v312, %v351
      %v359 = vadd.f32 %v313, %v352
      %v360 = vadd.f32 %v314, %v353
      %v361 = vadd.f32 %v315, %v354
      %v362 = vadd.f32 %v316, %v355
      %v363 = vadd.f32 %v317, %v356
      %s364 = scalar_lea.vmem %s165, 192
      %v365 = vld [vmem:[%s364] sm:$0x7f]
      %v366 = vld [vmem:[%s364 + $0x8] sm:$0x7f]
      %v367 = vld [vmem:[%s364 + $0x10] sm:$0x7f]
      %v368 = vld [vmem:[%s364 + $0x18] sm:$0x7f]
      %v369 = vld [vmem:[%s364 + $0x20] sm:$0x7f]
      %v370 = vld [vmem:[%s364 + $0x28] sm:$0x7f]
      %v371 = vld [vmem:[%s364 + $0x30] sm:$0x7f]
      %v372 = vld [vmem:[%s0 + $0x4] sm:$0x1]
      %v373 = vlaneseq
      %v374 = vshrl.u32 %v373, 7
      %v375 = vsub.s32 0, %v374
      %v376 = vrot.slane %v372, %v375
      %v377 = vmul.f32 %v376, %v365
      %v378 = vmul.f32 %v376, %v366
      %v379 = vmul.f32 %v376, %v367
      %v380 = vmul.f32 %v376, %v368
      %v381 = vmul.f32 %v376, %v369
      %v382 = vmul.f32 %v376, %v370
      %v383 = vmul.f32 %v376, %v371
      %v384 = vadd.f32 %v338, %v377
      %v385 = vadd.f32 %v339, %v378
      %v386 = vadd.f32 %v340, %v379
      %v387 = vadd.f32 %v341, %v380
      %v388 = vadd.f32 %v342, %v381
      %v389 = vadd.f32 %v343, %v382
      %v390 = vadd.f32 %v344, %v383
      %v391 = vld [vmem:[%s207 + $0x4] sm:$0x1]
      %v392 = vlaneseq
      %v393 = vshrl.u32 %v392, 7
      %v394 = vsub.s32 0, %v393
      %v395 = vrot.slane %v391, %v394
      %v396 = vmul.f32 %v395, %v365
      %v397 = vmul.f32 %v395, %v366
      %v398 = vmul.f32 %v395, %v367
      %v399 = vmul.f32 %v395, %v368
      %v400 = vmul.f32 %v395, %v369
      %v401 = vmul.f32 %v395, %v370
      %v402 = vmul.f32 %v395, %v371
      %v403 = vadd.f32 %v357, %v396
      %v404 = vadd.f32 %v358, %v397
      %v405 = vadd.f32 %v359, %v398
      %v406 = vadd.f32 %v360, %v399
      %v407 = vadd.f32 %v361, %v400
      %v408 = vadd.f32 %v362, %v401
      %v409 = vadd.f32 %v363, %v402
      %v410 = vld [vmem:[%s318 + $0x1] sm:$0x7f]
      %v411 = vld [vmem:[%s318 + $0x9] sm:$0x7f]
      %v412 = vld [vmem:[%s318 + $0x11] sm:$0x7f]
      %v413 = vld [vmem:[%s318 + $0x19] sm:$0x7f]
      %v414 = vld [vmem:[%s318 + $0x21] sm:$0x7f]
      %v415 = vld [vmem:[%s318 + $0x29] sm:$0x7f]
      %v416 = vld [vmem:[%s318 + $0x31] sm:$0x7f]
      %v417 = vld [vmem:[%s0 + $0x5] sm:$0x1]
      %v418 = vlaneseq
      %v419 = vshrl.u32 %v418, 7
      %v420 = vsub.s32 0, %v419
      %v421 = vrot.slane %v417, %v420
      %v422 = vmul.f32 %v421, %v410
      %v423 = vmul.f32 %v421, %v411
      %v424 = vmul.f32 %v421, %v412
      %v425 = vmul.f32 %v421, %v413
      %v426 = vmul.f32 %v421, %v414
      %v427 = vmul.f32 %v421, %v415
      %v428 = vmul.f32 %v421, %v416
      %v429 = vadd.f32 %v384, %v422
      %v430 = vadd.f32 %v385, %v423
      %v431 = vadd.f32 %v386, %v424
      %v432 = vadd.f32 %v387, %v425
      %v433 = vadd.f32 %v388, %v426
      %v434 = vadd.f32 %v389, %v427
      %v435 = vadd.f32 %v390, %v428
      %v436 = vld [vmem:[%s207 + $0x5] sm:$0x1]
      %v437 = vlaneseq
      %v438 = vshrl.u32 %v437, 7
      %v439 = vsub.s32 0, %v438
      %v440 = vrot.slane %v436, %v439
      %v441 = vmul.f32 %v440, %v410
      %v442 = vmul.f32 %v440, %v411
      %v443 = vmul.f32 %v440, %v412
      %v444 = vmul.f32 %v440, %v413
      %v445 = vmul.f32 %v440, %v414
      %v446 = vmul.f32 %v440, %v415
      %v447 = vmul.f32 %v440, %v416
      %v448 = vadd.f32 %v403, %v441
      %v449 = vadd.f32 %v404, %v442
      %v450 = vadd.f32 %v405, %v443
      %v451 = vadd.f32 %v406, %v444
      %v452 = vadd.f32 %v407, %v445
      %v453 = vadd.f32 %v408, %v446
      %v454 = vadd.f32 %v409, %v447
      %s455 = scalar_lea.vmem %s165, 8
      %v456 = vld [vmem:[%s455] sm:$0x7f]
      %v457 = vld [vmem:[%s455 + $0x8] sm:$0x7f]
      %v458 = vld [vmem:[%s455 + $0x10] sm:$0x7f]
      %v459 = vld [vmem:[%s455 + $0x18] sm:$0x7f]
      %v460 = vld [vmem:[%s455 + $0x20] sm:$0x7f]
      %v461 = vld [vmem:[%s455 + $0x28] sm:$0x7f]
      %v462 = vld [vmem:[%s455 + $0x30] sm:$0x7f]
      %v463 = vld [vmem:[%s0 + $0x6] sm:$0x1]
      %v464 = vlaneseq
      %v465 = vshrl.u32 %v464, 7
      %v466 = vsub.s32 0, %v465
      %v467 = vrot.slane %v463, %v466
      %v468 = vmul.f32 %v467, %v456
      %v469 = vmul.f32 %v467, %v457
      %v470 = vmul.f32 %v467, %v458
      %v471 = vmul.f32 %v467, %v459
      %v472 = vmul.f32 %v467, %v460
      %v473 = vmul.f32 %v467, %v461
      %v474 = vmul.f32 %v467, %v462
      %v475 = vadd.f32 %v429, %v468
      %v476 = vadd.f32 %v430, %v469
      %v477 = vadd.f32 %v431, %v470
      %v478 = vadd.f32 %v432, %v471
      %v479 = vadd.f32 %v433, %v472
      %v480 = vadd.f32 %v434, %v473
      %v481 = vadd.f32 %v435, %v474
      %v482 = vld [vmem:[%s207 + $0x6] sm:$0x1]
      %v483 = vlaneseq
      %v484 = vshrl.u32 %v483, 7
      %v485 = vsub.s32 0, %v484
      %v486 = vrot.slane %v482, %v485
      %v487 = vmul.f32 %v486, %v456
      %v488 = vmul.f32 %v486, %v457
      %v489 = vmul.f32 %v486, %v458
      %v490 = vmul.f32 %v486, %v459
      %v491 = vmul.f32 %v486, %v460
      %v492 = vmul.f32 %v486, %v461
      %v493 = vmul.f32 %v486, %v462
      %v494 = vadd.f32 %v448, %v487
      %v495 = vadd.f32 %v449, %v488
      %v496 = vadd.f32 %v450, %v489
      %v497 = vadd.f32 %v451, %v490
      %v498 = vadd.f32 %v452, %v491
      %v499 = vadd.f32 %v453, %v492
      %v500 = vadd.f32 %v454, %v493
      %s501 = scalar_lea.vmem %s165, 72
      %v502 = vld [vmem:[%s501] sm:$0x7f]
      %v503 = vld [vmem:[%s501 + $0x8] sm:$0x7f]
      %v504 = vld [vmem:[%s501 + $0x10] sm:$0x7f]
      %v505 = vld [vmem:[%s501 + $0x18] sm:$0x7f]
      %v506 = vld [vmem:[%s501 + $0x20] sm:$0x7f]
      %v507 = vld [vmem:[%s501 + $0x28] sm:$0x7f]
      %v508 = vld [vmem:[%s501 + $0x30] sm:$0x7f]
      %v509 = vld [vmem:[%s0 + $0x7] sm:$0x1]
      %v510 = vlaneseq
      %v511 = vshrl.u32 %v510, 7
      %v512 = vsub.s32 0, %v511
      %v513 = vrot.slane %v509, %v512
      %v514 = vmul.f32 %v513, %v502
      %v515 = vmul.f32 %v513, %v503
      %v516 = vmul.f32 %v513, %v504
      %v517 = vmul.f32 %v513, %v505
      %v518 = vmul.f32 %v513, %v506
      %v519 = vmul.f32 %v513, %v507
      %v520 = vmul.f32 %v513, %v508
      %v521 = vadd.f32 %v475, %v514
      %v522 = vadd.f32 %v476, %v515
      %v523 = vadd.f32 %v477, %v516
      %v524 = vadd.f32 %v478, %v517
      %v525 = vadd.f32 %v479, %v518
      %v526 = vadd.f32 %v480, %v519
      %v527 = vadd.f32 %v481, %v520
      %v528 = vld [vmem:[%s207 + $0x7] sm:$0x1]
      %v529 = vlaneseq
      %v530 = vshrl.u32 %v529, 7
      %v531 = vsub.s32 0, %v530
      %v532 = vrot.slane %v528, %v531
      %v533 = vmul.f32 %v532, %v502
      %v534 = vmul.f32 %v532, %v503
      %v535 = vmul.f32 %v532, %v504
      %v536 = vmul.f32 %v532, %v505
      %v537 = vmul.f32 %v532, %v506
      %v538 = vmul.f32 %v532, %v507
      %v539 = vmul.f32 %v532, %v508
      %v540 = vadd.f32 %v494, %v533
      %v541 = vadd.f32 %v495, %v534
      %v542 = vadd.f32 %v496, %v535
      %v543 = vadd.f32 %v497, %v536
      %v544 = vadd.f32 %v498, %v537
      %v545 = vadd.f32 %v499, %v538
      %v546 = vadd.f32 %v500, %v539
      %v547 = vld [vmem:[%s455 + $0x1] sm:$0x7f]
      %v548 = vld [vmem:[%s455 + $0x9] sm:$0x7f]
      %v549 = vld [vmem:[%s455 + $0x11] sm:$0x7f]
      %v550 = vld [vmem:[%s455 + $0x19] sm:$0x7f]
      %v551 = vld [vmem:[%s455 + $0x21] sm:$0x7f]
      %v552 = vld [vmem:[%s455 + $0x29] sm:$0x7f]
      %v553 = vld [vmem:[%s455 + $0x31] sm:$0x7f]
      %v554 = vld [vmem:[%s0 + $0x8] sm:$0x1]
      %v555 = vlaneseq
      %v556 = vshrl.u32 %v555, 7
      %v557 = vsub.s32 0, %v556
      %v558 = vrot.slane %v554, %v557
      %v559 = vmul.f32 %v558, %v547
      %v560 = vmul.f32 %v558, %v548
      %v561 = vmul.f32 %v558, %v549
      %v562 = vmul.f32 %v558, %v550
      %v563 = vmul.f32 %v558, %v551
      %v564 = vmul.f32 %v558, %v552
      %v565 = vmul.f32 %v558, %v553
      %v566 = vadd.f32 %v521, %v559
      %v567 = vadd.f32 %v522, %v560
      %v568 = vadd.f32 %v523, %v561
      %v569 = vadd.f32 %v524, %v562
      %v570 = vadd.f32 %v525, %v563
      %v571 = vadd.f32 %v526, %v564
      %v572 = vadd.f32 %v527, %v565
      %v573 = vld [vmem:[%s207 + $0x8] sm:$0x1]
      %v574 = vlaneseq
      %v575 = vshrl.u32 %v574, 7
      %v576 = vsub.s32 0, %v575
      %v577 = vrot.slane %v573, %v576
      %v578 = vmul.f32 %v577, %v547
      %v579 = vmul.f32 %v577, %v548
      %v580 = vmul.f32 %v577, %v549
      %v581 = vmul.f32 %v577, %v550
      %v582 = vmul.f32 %v577, %v551
      %v583 = vmul.f32 %v577, %v552
      %v584 = vmul.f32 %v577, %v553
      %v585 = vadd.f32 %v540, %v578
      %v586 = vadd.f32 %v541, %v579
      %v587 = vadd.f32 %v542, %v580
      %v588 = vadd.f32 %v543, %v581
      %v589 = vadd.f32 %v544, %v582
      %v590 = vadd.f32 %v545, %v583
      %v591 = vadd.f32 %v546, %v584
      %vm592 = vcmask 30720
      %593 = vst.msk [vmem:[%s170] sm:$0x7f] %vm592, %v566
      %594 = vst.msk [vmem:[%s170 + $0x8] sm:$0x7f] %vm592, %v567
      %595 = vst.msk [vmem:[%s170 + $0x10] sm:$0x7f] %vm592, %v568
      %596 = vst.msk [vmem:[%s170 + $0x18] sm:$0x7f] %vm592, %v569
      %597 = vst.msk [vmem:[%s170 + $0x20] sm:$0x7f] %vm592, %v570
      %598 = vst.msk [vmem:[%s170 + $0x28] sm:$0x7f] %vm592, %v571
      %599 = vst.msk [vmem:[%s170 + $0x30] sm:$0x7f] %vm592, %v572
      %s600 = scalar_lea.vmem %s170, 56
      %601 = vst.msk [vmem:[%s600] sm:$0x7f] %vm592, %v585
      %602 = vst.msk [vmem:[%s600 + $0x8] sm:$0x7f] %vm592, %v586
      %603 = vst.msk [vmem:[%s600 + $0x10] sm:$0x7f] %vm592, %v587
      %604 = vst.msk [vmem:[%s600 + $0x18] sm:$0x7f] %vm592, %v588
      %605 = vst.msk [vmem:[%s600 + $0x20] sm:$0x7f] %vm592, %v589
      %606 = vst.msk [vmem:[%s600 + $0x28] sm:$0x7f] %vm592, %v590
      %607 = vst.msk [vmem:[%s600 + $0x30] sm:$0x7f] %vm592, %v591
      %p608 = scmp.lt.s32.totalorder %s14, 1
      %s609 = scalar_select %p608, %s14, 1
      %s610 = smul.addr %s609, 14
      %s611 = smul.addr %s610, 8
      %s612 = scalar_lea.vmem %s3, %s611
      // Predicated region
      $region33: #{depthwise_conv2d.1} parent=31 // pred_check
        %p613 = pneg %p100
      $region34: #{depthwise_conv2d.1} parent=31 // pred_check_branch
        %615 = sbr.rel (%p613) target = $region36
      $region35: #{depthwise_conv2d.1} parent=31 // pred_region
        _
      $region36: #{depthwise_conv2d.1} parent=31 // pred_fallthru
        _
    $region32: #{depthwise_conv2d.1} parent=5 // pred_fallthru
      _
    %p616 = scmp.le.s32.totalorder 2, %s9
    // Predicated region
    $region37: #{depthwise_conv2d.1} parent=5 // pred_check
      %p617 = pneg %p616
    $region38: #{depthwise_conv2d.1} parent=5 // pred_check_branch
      %619 = sbr.rel (%p617) target = $region40
    $region39: #{depthwise_conv2d.1} parent=5 // pred_region
      %s620 = ssub.s32 %s9, 2
      // Predicated region
      $region41: #{depthwise_conv2d.1} parent=39 // pred_check
        %p621 = pneg %p106
      $region42: #{depthwise_conv2d.1} parent=39 // pred_check_branch
        %623 = sbr.rel (%p621) target = $region44
      $region43: #{depthwise_conv2d.1} parent=39 // pred_region
        %p624 = scmp.lt.s32.totalorder %s15, 1
        %s625 = scalar_select %p624, %s15, 1
        %s626 = smul.addr %s625, 14
        %s627 = smul.addr %s626, 8
        %s628 = scalar_lea.vmem %s3, %s627
      $region44: #{depthwise_conv2d.1} parent=39 // pred_fallthru
        _
    $region40: #{depthwise_conv2d.1} parent=5 // pred_fallthru
      _
  $region6: #{depthwise_conv2d.1} parent=0 // loop_footer
    %s13 = sadd.s32 1, %s9
  $region7: #{depthwise_conv2d.1} parent=0 // loop_footer_branch
    %8 = sbr.rel target = $region3
  $region8: #{depthwise_conv2d.1} parent=0 // loop_exit
    _

</llo_original>
